<compile_context>
chip_gen: v7x
topology: tpu7x:2x2x1
jax: 0.10.0
libtpu: 0.0.40
codegen_flags: <defaults>
</compile_context>

<pallas_src>
import functools
import math

import jax
import jax.numpy as jnp
from jax.experimental import pallas as pl
from jax.experimental.pallas import tpu as pltpu


def _round_up(x, m):
    return (x + m - 1) // m * m


def _vmem_capacity_bytes():
    try:
        return int(pltpu.get_tpu_info().vmem_capacity_bytes)
    except Exception:
        return 128 * 1024 * 1024  # v5e/v6e default; v7x reports 64 MiB when queryable


def _film_kernel(x_ref, c_ref, w_ref, b_ref, o_ref, *, cin, cpad):
    """One (batch-block, time-tile) step.

    x_ref: (Bb, Cin,   Tt)   input features (channels on sublanes, time on lanes)
    c_ref: (Bb, Ccond, Tt)   condition features
    w_ref: (2*Cpad, Ccond)   rows [0:Cin] = W_gain, rows [Cpad:Cpad+Cin] = W_bias (zero pad)
    b_ref: (2*Cpad, 1)       rows [0:Cin] = b_gain + 1 (FiLM '+1' folded in), [Cpad:] = b_bias
    o_ref: (Bb, Cin,   Tt)
    """
    w = w_ref[...]
    b = b_ref[...]
    # Static unroll over the small batch block: one fused MXU matmul per batch row,
    # weights stay resident, no transposes / relayouts.
    for bi in range(x_ref.shape[0]):
        gb = jnp.dot(w, c_ref[bi], preferred_element_type=jnp.float32) + b   # (2*Cpad, Tt) f32
        gain = gb[:cin]                 # tile-aligned prefix slice (zero-cost view)
        bias = gb[cpad:cpad + cin]      # starts on a sublane-tile boundary (Cpad % 8 == 0)
        xf = x_ref[bi].astype(jnp.float32)
        o_ref[bi] = (xf * gain + bias).astype(o_ref.dtype)


def film(x, condition, w_gain, b_gain, w_bias, b_bias, *, time_tile=None):
    """FiLM forward.

    x:         (B, in_dim, T)
    condition: (B, cond_dim, T)
    w_gain, w_bias: (in_dim, cond_dim)   (Conv1d k=1 weights, kernel axis squeezed)
    b_gain, b_bias: (in_dim,)
    time_tile: optional cap on the time tile (testing / tuning).
    returns:   (B, in_dim, T)
    """
    B, Cin, T = x.shape
    Bc, Ccond, Tc = condition.shape
    assert (B, T) == (Bc, Tc)
    assert w_gain.shape == (Cin, Ccond) and w_bias.shape == (Cin, Ccond)
    assert b_gain.shape == (Cin,) and b_bias.shape == (Cin,)

    x_item = x.dtype.itemsize
    c_item = condition.dtype.itemsize
    w_dtype = condition.dtype  # keep bf16 storage when the model runs bf16

    # ---- weight packing (fused gain+bias conv, sublane-aligned split) ----------------
    row_align = 8 if x_item >= 4 else (16 if x_item == 2 else 32)
    Cpad = _round_up(Cin, row_align)

    w_cat = jnp.zeros((2 * Cpad, Ccond), dtype=w_dtype)
    w_cat = w_cat.at[:Cin].set(w_gain.astype(w_dtype))
    w_cat = w_cat.at[Cpad:Cpad + Cin].set(w_bias.astype(w_dtype))

    # Fold FiLM's "+1" into the gain bias -> kernel computes x * gain + bias.
    b_cat = jnp.zeros((2 * Cpad, 1), dtype=jnp.float32)
    b_cat = b_cat.at[:Cin, 0].set(b_gain.astype(jnp.float32) + 1.0)
    b_cat = b_cat.at[Cpad:Cpad + Cin, 0].set(b_bias.astype(jnp.float32))

    # ---- batch / time blocking --------------------------------------------------------
    # Small channel counts leave sublanes idle and make per-step overhead dominate,
    # so fold a few batch rows into each grid step.
    sub_rows = 8 if x_item >= 4 else 16
    Bb = max(1, min(B, max(1, sub_rows // max(Cin, 1)), 8))

    # Generation-aware VMEM budget for double-buffered activation tiles PLUS the
    # in-kernel f32 intermediates (gb and the f32 cast of x).
    capacity = _vmem_capacity_bytes()
    budget = 24 * 1024 * 1024 if capacity <= 64 * 1024 * 1024 else 48 * 1024 * 1024
    per_col = Bb * ((2 * Cin * x_item + Ccond * c_item) * 2   # x / out / cond, double-buffered
                    + (2 * Cpad + Cin) * 4)                   # f32 gb + f32 x intermediates
    tt = max(128, min(8192, (budget // max(per_col, 1)) // 128 * 128))
    if time_tile is not None and T > time_tile:
        tt = max(128, min(tt, _round_up(time_tile, 128)))
    if T <= tt:
        tt = T                                                # block == full dim is always legal

    n_t = pl.cdiv(T, tt)
    b_blocks = pl.cdiv(B, Bb)

    # v7x has 2 TensorCores: guarantee >= 2 (parallel) grid iterations.
    if b_blocks * n_t < 2:
        if T > 128:
            tt = min(tt, _round_up(pl.cdiv(T, 2), 128))
            n_t = pl.cdiv(T, tt)
        elif Bb > 1:
            Bb = pl.cdiv(Bb, 2)
            b_blocks = pl.cdiv(B, Bb)

    # Explicit scoped-VMEM limit with headroom under physical capacity.
    tiles = Bb * (2 * Cin * x_item + Ccond * c_item) * tt * 2
    interm = Bb * (2 * Cpad + Cin) * tt * 4
    weights = 2 * (w_cat.size * w_cat.dtype.itemsize + b_cat.size * 4)
    vmem_limit = int(min(0.8 * capacity,
                         max(16 * 1024 * 1024, 1.5 * (tiles + interm + weights))))

    kernel = functools.partial(_film_kernel, cin=Cin, cpad=Cpad)

    out = pl.pallas_call(
        kernel,
        out_shape=jax.ShapeDtypeStruct((B, Cin, T), x.dtype),
        grid_spec=pltpu.PrefetchScalarGridSpec(
            num_scalar_prefetch=0,
            grid=(b_blocks, n_t),
            in_specs=[
                pl.BlockSpec((Bb, Cin, tt), lambda b, t: (b, 0, t)),
                pl.BlockSpec((Bb, Ccond, tt), lambda b, t: (b, 0, t)),
                pl.BlockSpec((2 * Cpad, Ccond), lambda b, t: (0, 0)),
                pl.BlockSpec((2 * Cpad, 1), lambda b, t: (0, 0)),
            ],
            out_specs=pl.BlockSpec((Bb, Cin, tt), lambda b, t: (b, 0, t)),
        ),
        compiler_params=pltpu.CompilerParams(
            dimension_semantics=("parallel", "parallel"),
            vmem_limit_bytes=vmem_limit,
        ),
    )(x, condition, w_cat, b_cat)
    return out


# ----------------------- pure-JAX reference (for verification) -----------------------
def film_ref(x, cond, w_gain, b_gain, w_bias, b_bias):
    gain = jnp.einsum('oi,bit->bot', w_gain, cond) + b_gain[None, :, None]
    bias = jnp.einsum('oi,bit->bot', w_bias, cond) + b_bias[None, :, None]
    return x * (1.0 + gain) + bias


if __name__ == "__main__":
    key = jax.random.PRNGKey(0)

    # --- small shapes consistent with the module ---
    B, in_dim, cond_dim, T = 2, 4, 8, 16
    k1, k2, k3, k4 = jax.random.split(key, 4)
    x = jax.random.normal(k1, (B, in_dim, T), jnp.float32)
    cond = jax.random.normal(k2, (B, cond_dim, T), jnp.float32)

    # Parameters per the module's init: xavier_uniform weights, gain.bias=1, bias.bias=0.
    lim = math.sqrt(6.0 / (in_dim + cond_dim))
    w_gain = jax.random.uniform(k3, (in_dim, cond_dim), jnp.float32, -lim, lim)
    w_bias = jax.random.uniform(k4, (in_dim, cond_dim), jnp.float32, -lim, lim)
    b_gain = jnp.ones((in_dim,), jnp.float32)
    b_bias = jnp.zeros((in_dim,), jnp.float32)

    out = jax.block_until_ready(film(x, cond, w_gain, b_gain, w_bias, b_bias))
    ref = film_ref(x, cond, w_gain, b_gain, w_bias, b_bias)
    assert out.shape == (B, in_dim, T)
    assert jnp.allclose(out, ref, atol=1e-5, rtol=1e-5), "mismatch vs reference (small)"

    # --- larger T; forcing a small time tile exercises the multi-tile grid incl. a ragged
    #     final tile (masked writeback) and the batch-blocked path ---
    B2, C2, CC2, T2 = 2, 8, 16, 1300
    kk = jax.random.split(jax.random.PRNGKey(1), 4)
    x2 = jax.random.normal(kk[0], (B2, C2, T2), jnp.float32)
    c2 = jax.random.normal(kk[1], (B2, CC2, T2), jnp.float32)
    wg2 = jax.random.normal(kk[2], (C2, CC2), jnp.float32) * 0.1
    wb2 = jax.random.normal(kk[3], (C2, CC2), jnp.float32) * 0.1
    bg2 = jnp.ones((C2,), jnp.float32)
    bb2 = jnp.zeros((C2,), jnp.float32)

    ref2 = film_ref(x2, c2, wg2, bg2, wb2, bb2)
    out2a = jax.block_until_ready(film(x2, c2, wg2, bg2, wb2, bb2))               # big-tile path
    out2b = jax.block_until_ready(film(x2, c2, wg2, bg2, wb2, bb2, time_tile=256))  # tiled + ragged
    assert jnp.allclose(out2a, ref2, atol=1e-4, rtol=1e-4), "mismatch vs reference (full tile)"
    assert jnp.allclose(out2b, ref2, atol=1e-4, rtol=1e-4), "mismatch vs reference (ragged tiles)"

    print("KERNEL_OK")
</pallas_src>

<mosaic_0001>
module attributes {stable_mosaic.version = 11 : i64} {
  func.func @_film_kernel(%arg0: i32, %arg1: i32, %arg2: memref<1x4x16xf32, #tpu.memory_space<vmem>>, %arg3: memref<1x8x16xf32, #tpu.memory_space<vmem>>, %arg4: memref<16x8xf32, #tpu.memory_space<vmem>>, %arg5: memref<16x1xf32, #tpu.memory_space<vmem>>, %arg6: memref<1x4x16xf32, #tpu.memory_space<vmem>>) attributes {dimension_semantics = [#tpu.dimension_semantics<parallel>, #tpu.dimension_semantics<parallel>], iteration_bounds = array<i64: 2, 1>, scalar_prefetch = 0 : i64, scratch_operands = 0 : i64, tpu.core_type = #tpu.core_type<tc>, window_params = [{transform_indices = @transform_0, window_bounds = array<i64: 1, 4, 16>}, {transform_indices = @transform_1, window_bounds = array<i64: 1, 8, 16>}, {pipeline_mode = #tpu.pipeline_mode<synchronous>, transform_indices = @transform_2, window_bounds = array<i64: 16, 8>}, {pipeline_mode = #tpu.pipeline_mode<synchronous>, transform_indices = @transform_3, window_bounds = array<i64: 16, 1>}, {transform_indices = @transform_4, window_bounds = array<i64: 1, 4, 16>}]} {
    %c0 = arith.constant 0 : index
    %c0_0 = arith.constant 0 : index
    %0 = vector.load %arg4[%c0, %c0_0] : memref<16x8xf32, #tpu.memory_space<vmem>>, vector<16x8xf32>
    %c0_1 = arith.constant 0 : index
    %c0_2 = arith.constant 0 : index
    %1 = vector.load %arg5[%c0_1, %c0_2] : memref<16x1xf32, #tpu.memory_space<vmem>>, vector<16x1xf32>
    %c0_3 = arith.constant 0 : index
    %c0_4 = arith.constant 0 : index
    %c0_5 = arith.constant 0 : index
    %2 = vector.load %arg3[%c0_3, %c0_4, %c0_5] : memref<1x8x16xf32, #tpu.memory_space<vmem>>, vector<1x8x16xf32>
    %3 = vector.shape_cast %2 : vector<1x8x16xf32> to vector<8x16xf32>
    %cst = arith.constant dense<0.000000e+00> : vector<16x16xf32>
    %4 = tpu.matmul %0, %3, %cst {dimension_numbers = #tpu.dot_dimension_numbers<[1], [0], [0], [1], [0, 0, 1, 1], [], []>} : vector<16x8xf32>, vector<8x16xf32>, vector<16x16xf32> -> vector<16x16xf32>
    %5 = vector.broadcast %1 : vector<16x1xf32> to vector<16x16xf32>
    %6 = arith.addf %4, %5 : vector<16x16xf32>
    %7 = vector.extract_strided_slice %6 {offsets = [0, 0], sizes = [4, 16], strides = [1, 1]} : vector<16x16xf32> to vector<4x16xf32>
    %8 = vector.extract_strided_slice %6 {offsets = [8, 0], sizes = [4, 16], strides = [1, 1]} : vector<16x16xf32> to vector<4x16xf32>
    %c0_6 = arith.constant 0 : index
    %c0_7 = arith.constant 0 : index
    %c0_8 = arith.constant 0 : index
    %9 = vector.load %arg2[%c0_6, %c0_7, %c0_8] : memref<1x4x16xf32, #tpu.memory_space<vmem>>, vector<1x4x16xf32>
    %10 = vector.shape_cast %9 : vector<1x4x16xf32> to vector<4x16xf32>
    %11 = arith.mulf %10, %7 : vector<4x16xf32>
    %12 = arith.addf %11, %8 : vector<4x16xf32>
    %c0_9 = arith.constant 0 : index
    %c0_10 = arith.constant 0 : index
    %c0_11 = arith.constant 0 : index
    %13 = vector.load %arg6[%c0_9, %c0_10, %c0_11] : memref<1x4x16xf32, #tpu.memory_space<vmem>>, vector<1x4x16xf32>
    %14 = vector.shape_cast %13 : vector<1x4x16xf32> to vector<4x16xf32>
    %15 = vector.shape_cast %12 : vector<4x16xf32> to vector<1x4x16xf32>
    tpu.vector_store %arg6[%c0_9, %c0_10, %c0_11], %15 {strides = array<i32>} : memref<1x4x16xf32, #tpu.memory_space<vmem>>, vector<1x4x16xf32>,
    return
  }
  func.func @transform_0(%arg0: i32, %arg1: i32) -> (i32, i32, i32) {
    %c0_i32 = arith.constant 0 : i32
    %c0_i32_0 = arith.constant 0 : i32
    return %arg0, %c0_i32, %arg1 : i32, i32, i32
  }
  func.func @transform_1(%arg0: i32, %arg1: i32) -> (i32, i32, i32) {
    %c0_i32 = arith.constant 0 : i32
    %c0_i32_0 = arith.constant 0 : i32
    return %arg0, %c0_i32, %arg1 : i32, i32, i32
  }
  func.func @transform_2(%arg0: i32, %arg1: i32) -> (i32, i32) {
    %c0_i32 = arith.constant 0 : i32
    %c0_i32_0 = arith.constant 0 : i32
    %c0_i32_1 = arith.constant 0 : i32
    return %c0_i32, %c0_i32_0 : i32, i32
  }
  func.func @transform_3(%arg0: i32, %arg1: i32) -> (i32, i32) {
    %c0_i32 = arith.constant 0 : i32
    %c0_i32_0 = arith.constant 0 : i32
    %c0_i32_1 = arith.constant 0 : i32
    return %c0_i32, %c0_i32_0 : i32, i32
  }
  func.func @transform_4(%arg0: i32, %arg1: i32) -> (i32, i32, i32) {
    %c0_i32 = arith.constant 0 : i32
    %c0_i32_0 = arith.constant 0 : i32
    return %arg0, %c0_i32, %arg1 : i32, i32, i32
  }
}

</mosaic_0001>

<llo_original>
// kernel: tpu_custom_call.1
$region0: #{tpu_custom_call.1}
  #allocation0 [shape = 'u32[]', space=smem, size = 0x4, offset = 0x4, fixed_abs, tag = 'smem constant byte address 0x4 - core index']
  #allocation1 [shape = 'u32[144,128]{1,0:T(1,128)}', space=vmem, size = 0x12000, scoped, tag = 'internal scratch']
  %s0 = inlined_call_operand.vmem [shape: f32[2,4,16], index: 0, kind: input, shape index: {}]
  %s1 = inlined_call_operand.vmem [shape: f32[2,8,16], index: 1, kind: input, shape index: {}]
  %s2 = inlined_call_operand.vmem [shape: f32[16,8], index: 2, kind: input, shape index: {}]
  %s3 = inlined_call_operand.vmem [shape: f32[16,1], index: 3, kind: input, shape index: {}]
  %s4 = inlined_call_operand.hbm [shape: f32[2,4,16], index: 4, kind: output, shape index: {}]
  %s5 = sld [smem:[#allocation0]]
  $region49: #{tpu_custom_call.1} parent=0
    _
  %s7 = ssub.s32 1, %s5
  %s8 = scalar_select 0, %s7, %s5
  $region1: #{tpu_custom_call.1} parent=0
    #allocation2 [shape = 'u8[4096]{0}', space=vmem, size = 0x1000, scoped, tag = 'output window, operand 0']
    #allocation3 [shape = 's32[2]{0}', space=sflag, size = 0x8, scoped, tag = 'scoped memory for tpu_custom_call.1']
    %9 = vsyncpa [#allocation3], 0
    %s10 = scalar_lea.sflag [#allocation3], 1
    %11 = vsyncpa %s10, 0
    loop: start=0, step=1, limit=4
    $region2: #{tpu_custom_call.1} parent=1 // loop_pre_header
      _
    $region3: #{tpu_custom_call.1} parent=1 // loop_header
      %s13 = sphi 0, %s17
      %p14 = scmp.ge.s32.totalorder %s13, 4
      %s20 = sphi 0, %s32
      %s21 = sphi 0, %s28
      %s22 = sphi 0, %s20
      %s23 = sphi 0, %s21
      %s24 = sphi 0, %s22
      %s25 = sphi 0, %s23
      %s37 = sphi 0, %s39
      %s40 = sphi 0, %s37
      %s41 = sphi 0, %s40
      %s57 = sphi 0, %s41
      %s65 = sphi 0, %s67
      %s68 = sphi 0, %s65
      %s69 = sphi 0, %s68
      %s85 = sphi 0, %s69
      %s89 = sphi 0, %s89
      %s91 = sphi 0, %s89
      %s92 = sphi 0, %s91
      %s106 = sphi 0, %s92
      %s110 = sphi 0, %s110
      %s112 = sphi 0, %s110
      %s113 = sphi 0, %s112
      %s127 = sphi 0, %s113
      %s135 = sphi 0, %s137
      %s138 = sphi 0, %s135
      %s139 = sphi 0, %s138
      %s155 = sphi 0, %s139
    $region4: #{tpu_custom_call.1} parent=1 // loop_header_branch
      %16 = sbr.rel (%p14) target = $region8
    $region5: #{tpu_custom_call.1} parent=1 // loop_body
      %s18 = ssub.s32 %s13, 1
      %s19 = ssub.s32 %s13, 2
      %s26 = sadd.s32 1, %s21
      %p27 = scmp.ge.s32.totalorder %s26, 1
      %s28 = scalar_select %p27, 0, %s26
      %s29 = sadd.s32 1, %s20
      %s30 = scalar_select %p27, %s29, %s20
      %p31 = scmp.ge.s32.totalorder %s30, 2
      %s32 = scalar_select %p31, 0, %s30
      %s33 = ssub.s32 %s20, %s32
      %s34 = ssub.s32 %s21, %s28
      %s35 = sor.u32 %s33, %s34
      %p36 = scmp.eq.s32.totalorder %s35, 0
      %s38 = sadd.s32 %s37, 1
      %s39 = scalar_select %p36, %s37, %s38
      %p42 = pneg %p36
      %p43 = scmp.eq.s32.totalorder %s13, 1
      %p44 = por %p42, %p43
      %p45 = scmp.ne.s32.totalorder %s37, %s40
      %p46 = scmp.eq.s32.totalorder %s13, 0
      %p47 = por %p45, %p46
      %p48 = scmp.ne.s32.totalorder %s37, %s40
      %p49 = scmp.eq.s32.totalorder %s18, 1
      %p50 = por %p48, %p49
      %p51 = scmp.ne.s32.totalorder %s40, %s41
      %p52 = scmp.eq.s32.totalorder %s18, 0
      %p53 = por %p51, %p52
      %p54 = scmp.ne.s32.totalorder %s40, %s41
      %p55 = scmp.eq.s32.totalorder %s19, 1
      %p56 = por %p54, %p55
      %p58 = scmp.ne.s32.totalorder %s41, %s57
      %p59 = scmp.eq.s32.totalorder %s19, 0
      %p60 = por %p58, %p59
      %s61 = ssub.s32 %s20, %s32
      %s62 = ssub.s32 %s21, %s28
      %s63 = sor.u32 %s61, %s62
      %p64 = scmp.eq.s32.totalorder %s63, 0
      %s66 = sadd.s32 %s65, 1
      %s67 = scalar_select %p64, %s65, %s66
      %p70 = pneg %p64
      %p71 = scmp.eq.s32.totalorder %s13, 1
      %p72 = por %p70, %p71
      %p73 = scmp.ne.s32.totalorder %s65, %s68
      %p74 = scmp.eq.s32.totalorder %s13, 0
      %p75 = por %p73, %p74
      %p76 = scmp.ne.s32.totalorder %s65, %s68
      %p77 = scmp.eq.s32.totalorder %s18, 1
      %p78 = por %p76, %p77
      %p79 = scmp.ne.s32.totalorder %s68, %s69
      %p80 = scmp.eq.s32.totalorder %s18, 0
      %p81 = por %p79, %p80
      %p82 = scmp.ne.s32.totalorder %s68, %s69
      %p83 = scmp.eq.s32.totalorder %s19, 1
      %p84 = por %p82, %p83
      %p86 = scmp.ne.s32.totalorder %s69, %s85
      %p87 = scmp.eq.s32.totalorder %s19, 0
      %p88 = por %p86, %p87
      %s90 = sadd.s32 %s89, 1
      %p93 = scmp.eq.s32.totalorder %s13, 1
      %p94 = scmp.ne.s32.totalorder %s89, %s91
      %p95 = scmp.eq.s32.totalorder %s13, 0
      %p96 = por %p94, %p95
      %p97 = scmp.ne.s32.totalorder %s89, %s91
      %p98 = scmp.eq.s32.totalorder %s18, 1
      %p99 = por %p97, %p98
      %p100 = scmp.ne.s32.totalorder %s91, %s92
      %p101 = scmp.eq.s32.totalorder %s18, 0
      %p102 = por %p100, %p101
      %p103 = scmp.ne.s32.totalorder %s91, %s92
      %p104 = scmp.eq.s32.totalorder %s19, 1
      %p105 = por %p103, %p104
      %p107 = scmp.ne.s32.totalorder %s92, %s106
      %p108 = scmp.eq.s32.totalorder %s19, 0
      %p109 = por %p107, %p108
      %s111 = sadd.s32 %s110, 1
      %p114 = scmp.eq.s32.totalorder %s13, 1
      %p115 = scmp.ne.s32.totalorder %s110, %s112
      %p116 = scmp.eq.s32.totalorder %s13, 0
      %p117 = por %p115, %p116
      %p118 = scmp.ne.s32.totalorder %s110, %s112
      %p119 = scmp.eq.s32.totalorder %s18, 1
      %p120 = por %p118, %p119
      %p121 = scmp.ne.s32.totalorder %s112, %s113
      %p122 = scmp.eq.s32.totalorder %s18, 0
      %p123 = por %p121, %p122
      %p124 = scmp.ne.s32.totalorder %s112, %s113
      %p125 = scmp.eq.s32.totalorder %s19, 1
      %p126 = por %p124, %p125
      %p128 = scmp.ne.s32.totalorder %s113, %s127
      %p129 = scmp.eq.s32.totalorder %s19, 0
      %p130 = por %p128, %p129
      %s131 = ssub.s32 %s20, %s32
      %s132 = ssub.s32 %s21, %s28
      %s133 = sor.u32 %s131, %s132
      %p134 = scmp.eq.s32.totalorder %s133, 0
      %s136 = sadd.s32 %s135, 1
      %s137 = scalar_select %p134, %s135, %s136
      %p140 = pneg %p134
      %p141 = scmp.eq.s32.totalorder %s13, 1
      %p142 = por %p140, %p141
      %p143 = scmp.ne.s32.totalorder %s135, %s138
      %p144 = scmp.eq.s32.totalorder %s13, 0
      %p145 = por %p143, %p144
      %p146 = scmp.ne.s32.totalorder %s135, %s138
      %p147 = scmp.eq.s32.totalorder %s18, 1
      %p148 = por %p146, %p147
      %p149 = scmp.ne.s32.totalorder %s138, %s139
      %p150 = scmp.eq.s32.totalorder %s18, 0
      %p151 = por %p149, %p150
      %p152 = scmp.ne.s32.totalorder %s138, %s139
      %p153 = scmp.eq.s32.totalorder %s19, 1
      %p154 = por %p152, %p153
      %p156 = scmp.ne.s32.totalorder %s139, %s155
      %p157 = scmp.eq.s32.totalorder %s19, 0
      %p158 = por %p156, %p157
      %p159 = scmp.le.s32.totalorder 1, %s13
      %p160 = scmp.lt.s32.totalorder %s13, 3
      %p161 = pnand %p159, %p160
      %p162 = pneg %p161
      // Predicated region
      $region9: #{tpu_custom_call.1} parent=5 // pred_check
        _
      $region10: #{tpu_custom_call.1} parent=5 // pred_check_branch
        %164 = sbr.rel (%p161) target = $region12
      $region11: #{tpu_custom_call.1} parent=5 // pred_region
        %s165 = ssub.s32 %s13, 1
        // Predicated region
        $region13: #{tpu_custom_call.1} parent=11 // pred_check
          %p166 = pneg %p102
        $region14: #{tpu_custom_call.1} parent=11 // pred_check_branch
          %168 = sbr.rel (%p166) target = $region16
        $region15: #{tpu_custom_call.1} parent=11 // pred_region
          _
        $region16: #{tpu_custom_call.1} parent=11 // pred_fallthru
          _
        // Predicated region
        $region17: #{tpu_custom_call.1} parent=11 // pred_check
          %p169 = pneg %p123
        $region18: #{tpu_custom_call.1} parent=11 // pred_check_branch
          %171 = sbr.rel (%p169) target = $region20
        $region19: #{tpu_custom_call.1} parent=11 // pred_region
          _
        $region20: #{tpu_custom_call.1} parent=11 // pred_fallthru
          _
      $region12: #{tpu_custom_call.1} parent=5 // pred_fallthru
        _
      %p172 = scmp.lt.s32.totalorder %s13, 2
      // Predicated region
      $region21: #{tpu_custom_call.1} parent=5 // pred_check
        %p173 = pneg %p172
      $region22: #{tpu_custom_call.1} parent=5 // pred_check_branch
        %175 = sbr.rel (%p173) target = $region24
      $region23: #{tpu_custom_call.1} parent=5 // pred_region
        // Predicated region
        $region25: #{tpu_custom_call.1} parent=23 // pred_check
          %p176 = pneg %p47
        $region26: #{tpu_custom_call.1} parent=23 // pred_check_branch
          %178 = sbr.rel (%p176) target = $region28
        $region27: #{tpu_custom_call.1} parent=23 // pred_region
          %p179 = scmp.lt.s32.totalorder %s20, 1
          %s180 = scalar_select %p179, %s20, 1
          %p181 = scmp.lt.s32.totalorder %s21, 0
          %s182 = scalar_select %p181, %s21, 0
          %s183 = sadd.s32 %s182, %s180
          %s184 = smul.addr %s183, 4
          %s185 = scalar_lea.vmem %s0, %s184
        $region28: #{tpu_custom_call.1} parent=23 // pred_fallthru
          _
        // Predicated region
        $region29: #{tpu_custom_call.1} parent=23 // pred_check
          %p186 = pneg %p75
        $region30: #{tpu_custom_call.1} parent=23 // pred_check_branch
          %188 = sbr.rel (%p186) target = $region32
        $region31: #{tpu_custom_call.1} parent=23 // pred_region
          %p189 = scmp.lt.s32.totalorder %s20, 1
          %s190 = scalar_select %p189, %s20, 1
          %p191 = scmp.lt.s32.totalorder %s21, 0
          %s192 = scalar_select %p191, %s21, 0
          %s193 = sadd.s32 %s192, %s190
          %s194 = smul.addr %s193, 8
          %s195 = scalar_lea.vmem %s1, %s194
        $region32: #{tpu_custom_call.1} parent=23 // pred_fallthru
          _
      $region24: #{tpu_custom_call.1} parent=5 // pred_fallthru
        _
      %p196 = scmp.le.s32.totalorder 1, %s13
      %p197 = scmp.lt.s32.totalorder %s13, 3
      %p198 = pnand %p196, %p197
      %p199 = pneg %p198
      // Predicated region
      $region33: #{tpu_custom_call.1} parent=5 // pred_check
        _
      $region34: #{tpu_custom_call.1} parent=5 // pred_check_branch
        %201 = sbr.rel (%p198) target = $region36
      $region35: #{tpu_custom_call.1} parent=5 // pred_region
        %s202 = ssub.s32 %s13, 1
        %p203 = scmp.lt.s32.totalorder %s22, 1
        %s204 = scalar_select %p203, %s22, 1
        %p205 = scmp.lt.s32.totalorder %s23, 0
        %s206 = scalar_select %p205, %s23, 0
        %s207 = sadd.s32 %s206, %s204
        %s208 = smul.addr %s207, 4
        %s209 = scalar_lea.vmem %s0, %s208
        %p210 = pneg %p53
        %p211 = pneg %p50
        %p212 = scmp.lt.s32.totalorder %s22, 1
        %s213 = scalar_select %p212, %s22, 1
        %p214 = scmp.lt.s32.totalorder %s23, 0
        %s215 = scalar_select %p214, %s23, 0
        %s216 = sadd.s32 %s215, %s213
        %s217 = smul.addr %s216, 8
        %s218 = scalar_lea.vmem %s1, %s217
        %p219 = pneg %p81
        %p220 = pneg %p78
        %p221 = pneg %p102
        %p222 = pneg %p99
        %p223 = pneg %p123
        %p224 = pneg %p120
        %p225 = pneg %p151
        %p226 = pneg %p148
        %s227 = sand.u32 %s138, 1
        %s228 = scalar_lea.sflag [#allocation3], %s227
        %s229 = sand.u32 %s138, 1
        %s230 = smul.addr %s229, 4
        %s231 = scalar_lea.vmem [#allocation2], %s230
        %p232 = scmp.lt.s32.totalorder %s22, 1
        %s233 = scalar_select %p232, %s22, 1
        %p234 = scmp.lt.s32.totalorder %s23, 0
        %s235 = scalar_select %p234, %s23, 0
        %s236 = sadd.s32 %s235, %s233
        %s237 = smul.addr %s236, 4
        %s238 = scalar_lea.vmem %s0, %s237
        %p239 = scmp.lt.s32.totalorder %s22, 1
        %s240 = scalar_select %p239, %s22, 1
        %p241 = scmp.lt.s32.totalorder %s23, 0
        %s242 = scalar_select %p241, %s23, 0
        %s243 = sadd.s32 %s242, %s240
        %s244 = smul.addr %s243, 8
        %s245 = scalar_lea.vmem %s1, %s244
        %v246 = vld [vmem:[%s2] sm:$0xff]
        %v247 = vld [vmem:[%s2 + $0x8] sm:$0xff]
        %v248 = vld [vmem:[%s3] sm:$0xff]
        %v249 = vld [vmem:[%s3 + $0x8] sm:$0xff]
        %v250 = vld [vmem:[%s245] sm:$0xff]
        %252 = vset.pattern.permute.xlu0 0
        %253 = vperm.xlu0 %252, %v248
        %v254 = vpop.permute.xlu0 %253
        %257 = vset.pattern.permute.xlu0 0
        %258 = vperm.xlu0 %257, %v249
        %v259 = vpop.permute.xlu0 %258
        %vm261 = vcmask 64512
        %v263 = vsel %vm261, %v246, 0
        %v266 = vsel %vm261, %v247, 0
        %268 = vmatprep.subr.mxu0 0.0
        %269 = vmatpush1.msra.mxu0 %v250
        %270 = vmatprep.subr.mxu0 0.0
        %271 = vmatpush1.msra.mxu0 0.0
        %272 = vmatprep.subr.mxu0 0.0
        %273 = vmatpush1.msra.mxu0 0.0
        %274 = vmatprep.subr.mxu0 0.0
        %275 = vmatpush1.msra.mxu0 0.0
        %276 = vmatprep.subr.mxu0 0.0
        %277 = vmatpush1.msra.mxu0 0.0
        %278 = vmatprep.subr.mxu0 0.0
        %279 = vmatpush1.msra.mxu0 0.0
        %280 = vmatprep.subr.mxu0 0.0
        %281 = vmatpush1.msra.mxu0 0.0
        %282 = vmatprep.subr.mxu0 0.0
        %283 = vmatpush1.msra.mxu0 0.0
        %284 = vmatprep.subr.mxu0 0.0
        %285 = vmatpush1.msra.mxu0 0.0
        %286 = vmatprep.subr.mxu0 0.0
        %287 = vmatpush1.msra.mxu0 0.0
        %288 = vmatprep.subr.mxu0 0.0
        %289 = vmatpush1.msra.mxu0 0.0
        %290 = vmatprep.subr.mxu0 0.0
        %291 = vmatpush1.msra.mxu0 0.0
        %292 = vmatprep.subr.mxu0 0.0
        %293 = vmatpush1.msra.mxu0 0.0
        %294 = vmatprep.subr.mxu0 0.0
        %295 = vmatpush1.msra.mxu0 0.0
        %296 = vmatprep.subr.mxu0 0.0
        %297 = vmatpush1.msra.mxu0 0.0
        %298 = vmatprep.subr.mxu0 0.0
        %299 = vmatpush1.msra.mxu0 0.0
        %300 = vmatprep.subr.mxu0 0.0
        %301 = vmatpush1.msra.mxu0 0.0
        %302 = vmatprep.subr.mxu0 0.0
        %303 = vmatpush1.msra.mxu0 0.0
        %304 = vmatprep.subr.mxu0 0.0
        %305 = vmatpush1.msra.mxu0 0.0
        %306 = vmatprep.subr.mxu0 0.0
        %307 = vmatpush1.msra.mxu0 0.0
        %308 = vmatprep.subr.mxu0 0.0
        %309 = vmatpush1.msra.mxu0 0.0
        %310 = vmatprep.subr.mxu0 0.0
        %311 = vmatpush1.msra.mxu0 0.0
        %312 = vmatprep.subr.mxu0 0.0
        %313 = vmatpush1.msra.mxu0 0.0
        %314 = vmatprep.subr.mxu0 0.0
        %315 = vmatpush1.msra.mxu0 0.0
        %316 = vmatprep.subr.mxu0 0.0
        %317 = vmatpush1.msra.mxu0 0.0
        %318 = vmatprep.subr.mxu0 0.0
        %319 = vmatpush1.msra.mxu0 0.0
        %320 = vmatprep.subr.mxu0 0.0
        %321 = vmatpush1.msra.mxu0 0.0
        %322 = vmatprep.subr.mxu0 0.0
        %323 = vmatpush1.msra.mxu0 0.0
        %324 = vmatprep.subr.mxu0 0.0
        %325 = vmatpush1.msra.mxu0 0.0
        %326 = vmatprep.subr.mxu0 0.0
        %327 = vmatpush1.msra.mxu0 0.0
        %328 = vmatprep.subr.mxu0 0.0
        %329 = vmatpush1.msra.mxu0 0.0
        %330 = vmatprep.subr.mxu0 0.0
        %331 = vmatpush1.msra.mxu0 0.0
        %332 = vmatprep.mubr.f32.mxu0 0.0
        %333 = vmatmul.mubr.f32.gmra.mrb[0].mxu0 %v263
        %v334 = vpop.f32.mrb[0].mxu0
        %v335 = vadd.f32 %v254, %v334
        %v336 = vpop.f32.mrb[0].mxu0
        %337 = vmatprep.mubr.f32.mxu0 0.0
        %338 = vmatmul.mubr.f32.gmra.mrb[0].mxu0 %v266
        %v339 = vpop.f32.mrb[0].mxu0
        %v340 = vadd.f32 %v259, %v339
        %v341 = vpop.f32.mrb[0].mxu0
        %342 = vdwg.mxu0
        %v343 = vld [vmem:[%s238] sm:$0xf]
        %v344 = vmul.f32 %v343, %v335
        %v345 = vadd.f32 %v344, %v340
        %vm346 = vcmask 125952
        %347 = vst.msk [vmem:[%s231] sm:$0xf] %vm346, %v345
        %s348 = sand.u32 %s138, 1
        %s349 = scalar_lea.sflag [#allocation3], %s348
        %s350 = sand.u32 %s138, 1
        %s351 = smul.addr %s350, 4
        %s352 = scalar_lea.vmem [#allocation2], %s351
        // Predicated region
        $region37: #{tpu_custom_call.1} parent=35 // pred_check
          %p353 = pneg %p148
        $region38: #{tpu_custom_call.1} parent=35 // pred_check_branch
          %355 = sbr.rel (%p353) target = $region40
        $region39: #{tpu_custom_call.1} parent=35 // pred_region
          %s357 = ssub.s32 64, 64
          %358 = vsyncadd %s349, %s357
          %s359 = sadd.s32 %s23, %s22
          %s360 = smul.addr %s359, 64
          %s361 = scalar_lea.hbm %s4, %s360
          %s363 = sshll.u32 %s352, 4
          %s364 = int_to_ptr.vmem [resolvable:$true] %s363
          %366 = dma.vmem_to_hbm [thread:$0]  %s364, 64, %s361, %s349
        $region40: #{tpu_custom_call.1} parent=35 // pred_fallthru
          _
      $region36: #{tpu_custom_call.1} parent=5 // pred_fallthru
        _
      %p367 = scmp.le.s32.totalorder 2, %s13
      // Predicated region
      $region41: #{tpu_custom_call.1} parent=5 // pred_check
        %p368 = pneg %p367
      $region42: #{tpu_custom_call.1} parent=5 // pred_check_branch
        %370 = sbr.rel (%p368) target = $region44
      $region43: #{tpu_custom_call.1} parent=5 // pred_region
        %s371 = ssub.s32 %s13, 2
        // Predicated region
        $region45: #{tpu_custom_call.1} parent=43 // pred_check
          %p372 = pneg %p154
        $region46: #{tpu_custom_call.1} parent=43 // pred_check_branch
          %374 = sbr.rel (%p372) target = $region48
        $region47: #{tpu_custom_call.1} parent=43 // pred_region
          %s375 = sand.u32 %s139, 1
          %s376 = scalar_lea.sflag [#allocation3], %s375
          %s377 = sand.u32 %s139, 1
          %s378 = smul.addr %s377, 4
          %s379 = scalar_lea.vmem [#allocation2], %s378
          %380 = dma.done %s376, 64
        $region48: #{tpu_custom_call.1} parent=43 // pred_fallthru
          _
      $region44: #{tpu_custom_call.1} parent=5 // pred_fallthru
        _
    $region6: #{tpu_custom_call.1} parent=1 // loop_footer
      %s17 = sadd.s32 1, %s13
    $region7: #{tpu_custom_call.1} parent=1 // loop_footer_branch
      %12 = sbr.rel target = $region3
    $region8: #{tpu_custom_call.1} parent=1 // loop_exit
      _
    %381 = vsyncpa [#allocation3], 1
    %s382 = scalar_lea.sflag [#allocation3], 1
    %383 = vsyncpa %s382, 1

</llo_original>
